<compile_context>
chip_gen: v7x
topology: tpu7x:2x2x1
jax: 0.10.0
libtpu: 0.0.40
codegen_flags: <defaults>
</compile_context>

<pallas_src>
import functools

import numpy as np
import jax
import jax.numpy as jnp
from jax.experimental import pallas as pl
from jax.experimental.pallas import tpu as pltpu


def _idft_matrix(n):
    col, row = np.meshgrid(np.arange(n), np.arange(n))
    omega = np.exp(2j * np.pi / n)
    return np.power(omega, col * row)


def _hann_periodic(win_length):
    # librosa.filters.get_window('hann', win_length, fftbins=True)
    n = np.arange(win_length)
    return 0.5 - 0.5 * np.cos(2.0 * np.pi * n / win_length)


def _istft_kernel(x_ref, w_ref, y_ref, *, batch, tout, hop, rows_per_batch):
    """Single-program ISTFT: fused IDFT matmul + in-register overlap-add.

    x_ref : (batch*tout, 2*n_fft)  [xr | xi] frames, all batches stacked on M
    w_ref : (2*n_fft, n_fft)       fused windowed-IDFT weight [Wr ; -Wi]
    y_ref : (R, n_fft)             R = round_up(batch*rows_per_batch, 8);
                                   row (b*rows_per_batch + m) holds samples
                                   [m*n_fft, (m+1)*n_fft) of batch b's waveform.
    """
    n_fft = w_ref.shape[1]
    n_phase = n_fft // hop
    f32 = jnp.float32

    # One MXU matmul for every frame of every batch:
    #   (batch*tout, 2*n_fft) @ (2*n_fft, n_fft); N = n_fft = 128 lanes.
    fr = jnp.dot(x_ref[...], w_ref[...], preferred_element_type=f32)

    # Hop-phase overlap-add, fully in registers; one aligned full-tile store.
    # Frame t = n_phase*m + r covers samples [t*hop, t*hop + n_fft): that is
    # row m lanes [r*hop, n_fft) plus row m+1 lanes [0, r*hop) — a static lane
    # shift of the frame, assembled with zero-pad + slice + concat.
    rows = []
    for b in range(batch):
        acc = [jnp.zeros((1, n_fft), f32) for _ in range(rows_per_batch)]
        for t in range(tout):
            m, r = divmod(t, n_phase)
            frame = fr[b * tout + t: b * tout + t + 1, :]          # (1, n_fft)
            s = r * hop
            if s == 0:
                acc[m] = acc[m] + frame
            else:
                head = jnp.concatenate(
                    [jnp.zeros((1, s), f32), frame[:, : n_fft - s]], axis=1)
                acc[m] = acc[m] + head
                if m + 1 < rows_per_batch:
                    tail = jnp.concatenate(
                        [frame[:, n_fft - s:], jnp.zeros((1, n_fft - s), f32)],
                        axis=1)
                    acc[m + 1] = acc[m + 1] + tail
        rows.extend(acc)

    n_pad = y_ref.shape[0] - batch * rows_per_batch
    if n_pad > 0:
        rows.append(jnp.zeros((n_pad, n_fft), f32))
    y_ref[...] = jnp.concatenate(rows, axis=0)      # single lane-dense store


class ISTFT:
    def __init__(self, n_fft=128, hop_length=None, win_length=None,
                 window="hann", center=True, pad_mode="reflect"):
        assert window == "hann"
        self.n_fft = n_fft
        self.center = center
        win_length = n_fft if win_length is None else win_length
        hop_length = int(win_length // 4) if hop_length is None else hop_length
        self.hop_length = hop_length
        # Hop-phase OLA needs hop | n_fft (true for the module's defaults).
        # TODO(synk): general hop values would need a different OLA path.
        assert n_fft % hop_length == 0

        W = _idft_matrix(n_fft) / n_fft
        win = _hann_periodic(win_length)
        if win_length < n_fft:
            pad = n_fft - win_length
            win = np.pad(win, (pad // 2, pad - pad // 2))
        Wwin = W * win[None, :]
        # PyTorch conv weight[o, c] = (W*window).T[o, c] = (W*window)[c, o];
        # kernel computes x[t, :] @ Wmat, so Wmat[c, o] = (W*window)[c, o].
        wr = np.real(Wwin).astype(np.float32)
        wi = np.imag(Wwin).astype(np.float32)
        self.wr = jnp.asarray(wr)                      # kept for the reference
        self.wi = jnp.asarray(wi)
        # Fused K-stacked weight: xr @ Wr - xi @ Wi == [xr | xi] @ [[Wr], [-Wi]]
        self.w_fused = jnp.asarray(np.concatenate([wr, -wi], axis=0))  # (2n, n)

    def __call__(self, real, imag, length):
        n_fft, hop = self.n_fft, self.hop_length
        B, C, T = real.shape
        assert C == n_fft and imag.shape == real.shape

        # Conv1d stride=hop with effective 1x1 taps: sample frames at
        # 0, hop, 2*hop, ...; stack all batches' frames on the matmul M axis.
        xr = jnp.transpose(real[:, :, ::hop], (0, 2, 1)).astype(jnp.float32)
        xi = jnp.transpose(imag[:, :, ::hop], (0, 2, 1)).astype(jnp.float32)
        tout = xr.shape[1]
        x = jnp.concatenate([xr, xi], axis=-1).reshape(B * tout, 2 * n_fft)

        l_full = (tout - 1) * hop + n_fft               # reconstructed length
        rows_per_batch = -(-l_full // n_fft)            # ceil(l_full / n_fft)
        r_total = -(-(B * rows_per_batch) // 8) * 8     # pad rows to sublane tile

        start = n_fft // 2 if self.center else 0
        if start + length > l_full:
            raise ValueError(
                f"requested length {length} (+ center trim {start}) exceeds "
                f"reconstructed waveform length {l_full}")

        kernel = functools.partial(
            _istft_kernel, batch=B, tout=tout, hop=hop,
            rows_per_batch=rows_per_batch)

        y_rows = pl.pallas_call(
            kernel,
            out_shape=jax.ShapeDtypeStruct((r_total, n_fft), jnp.float32),
            grid_spec=pltpu.PrefetchScalarGridSpec(
                num_scalar_prefetch=0,
                grid=(1,),          # single fused program (grid is trivial)
                in_specs=[
                    pl.BlockSpec((B * tout, 2 * n_fft), lambda i: (0, 0)),
                    pl.BlockSpec((2 * n_fft, n_fft), lambda i: (0, 0)),
                ],
                out_specs=pl.BlockSpec((r_total, n_fft), lambda i: (0, 0)),
            ),
            compiler_params=pltpu.CompilerParams(
                dimension_semantics=("arbitrary",)),
        )(x, self.w_fused)

        # (R, 128) rows -> per-batch contiguous waveform; center-trim and cut.
        y_full = y_rows[: B * rows_per_batch].reshape(B, rows_per_batch * n_fft)
        return y_full[:, start:start + length]


def _reference(real, imag, wr, wi, hop, n_fft, center, length):
    # Pure-JAX reference for validation.
    xr = jnp.transpose(real[:, :, ::hop], (0, 2, 1)).astype(jnp.float32)
    xi = jnp.transpose(imag[:, :, ::hop], (0, 2, 1)).astype(jnp.float32)
    fr = xr @ wr - xi @ wi
    B, tout, _ = fr.shape
    l_full = (tout - 1) * hop + n_fft
    y = jnp.zeros((B, l_full), jnp.float32)
    for t in range(tout):
        y = y.at[:, t * hop:t * hop + n_fft].add(fr[:, t, :])
    start = n_fft // 2 if center else 0
    return y[:, start:start + length]


if __name__ == "__main__":
    B, n_fft, T = 2, 128, 128
    key = jax.random.PRNGKey(0)
    k1, k2 = jax.random.split(key)
    real = jax.random.normal(k1, (B, n_fft, T), dtype=jnp.float32)
    imag = jax.random.normal(k2, (B, n_fft, T), dtype=jnp.float32)

    istft = ISTFT(n_fft=n_fft)           # hop_length = 32, hann window
    length = 96                           # requested output waveform length

    y = istft(real, imag, length)
    jax.block_until_ready(y)

    assert y.shape == (B, length), y.shape
    y_ref = _reference(real, imag, istft.wr, istft.wi,
                       istft.hop_length, n_fft, istft.center, length)
    np_err = float(jnp.max(jnp.abs(y - y_ref)))
    assert np_err < 2e-3, f"max abs err {np_err}"
    print("KERNEL_OK")
</pallas_src>

<mosaic_0001>
module attributes {stable_mosaic.version = 11 : i64} {
  func.func @_istft_kernel(%arg0: i32, %arg1: memref<8x256xf32, #tpu.memory_space<vmem>>, %arg2: memref<256x128xf32, #tpu.memory_space<vmem>>, %arg3: memref<8x128xf32, #tpu.memory_space<vmem>>) attributes {dimension_semantics = [#tpu.dimension_semantics<arbitrary>], iteration_bounds = array<i64: 1>, scalar_prefetch = 0 : i64, scratch_operands = 0 : i64, tpu.core_type = #tpu.core_type<tc>, window_params = [{pipeline_mode = #tpu.pipeline_mode<synchronous>, transform_indices = @transform_0, window_bounds = array<i64: 8, 256>}, {pipeline_mode = #tpu.pipeline_mode<synchronous>, transform_indices = @transform_1, window_bounds = array<i64: 256, 128>}, {pipeline_mode = #tpu.pipeline_mode<synchronous>, transform_indices = @transform_2, window_bounds = array<i64: 8, 128>}]} {
    %c0 = arith.constant 0 : index
    %c0_0 = arith.constant 0 : index
    %0 = vector.load %arg1[%c0, %c0_0] : memref<8x256xf32, #tpu.memory_space<vmem>>, vector<8x256xf32>
    %c0_1 = arith.constant 0 : index
    %c0_2 = arith.constant 0 : index
    %1 = vector.load %arg2[%c0_1, %c0_2] : memref<256x128xf32, #tpu.memory_space<vmem>>, vector<256x128xf32>
    %cst = arith.constant dense<0.000000e+00> : vector<8x128xf32>
    %2 = tpu.matmul %0, %1, %cst {dimension_numbers = #tpu.dot_dimension_numbers<[1], [0], [0], [1], [0, 0, 1, 1], [], []>} : vector<8x256xf32>, vector<256x128xf32>, vector<8x128xf32> -> vector<8x128xf32>
    %cst_3 = arith.constant 0.000000e+00 : f32
    %3 = vector.broadcast %cst_3 : f32 to vector<1x128xf32>
    %cst_4 = arith.constant 0.000000e+00 : f32
    %4 = vector.broadcast %cst_4 : f32 to vector<1x128xf32>
    %5 = vector.extract_strided_slice %2 {offsets = [0, 0], sizes = [1, 128], strides = [1, 1]} : vector<8x128xf32> to vector<1x128xf32>
    %6 = arith.addf %3, %5 : vector<1x128xf32>
    %7 = vector.extract_strided_slice %2 {offsets = [1, 0], sizes = [1, 128], strides = [1, 1]} : vector<8x128xf32> to vector<1x128xf32>
    %cst_5 = arith.constant 0.000000e+00 : f32
    %8 = vector.broadcast %cst_5 : f32 to vector<1x32xf32>
    %9 = vector.extract_strided_slice %7 {offsets = [0, 0], sizes = [1, 96], strides = [1, 1]} : vector<1x128xf32> to vector<1x96xf32>
    %10 = tpu.concatenate %8, %9 in 1 : vector<1x32xf32>, vector<1x96xf32> -> vector<1x128xf32>
    %11 = arith.addf %6, %10 : vector<1x128xf32>
    %12 = vector.extract_strided_slice %7 {offsets = [0, 96], sizes = [1, 32], strides = [1, 1]} : vector<1x128xf32> to vector<1x32xf32>
    %cst_6 = arith.constant 0.000000e+00 : f32
    %13 = vector.broadcast %cst_6 : f32 to vector<1x96xf32>
    %14 = tpu.concatenate %12, %13 in 1 : vector<1x32xf32>, vector<1x96xf32> -> vector<1x128xf32>
    %15 = arith.addf %4, %14 : vector<1x128xf32>
    %16 = vector.extract_strided_slice %2 {offsets = [2, 0], sizes = [1, 128], strides = [1, 1]} : vector<8x128xf32> to vector<1x128xf32>
    %cst_7 = arith.constant 0.000000e+00 : f32
    %17 = vector.broadcast %cst_7 : f32 to vector<1x64xf32>
    %18 = vector.extract_strided_slice %16 {offsets = [0, 0], sizes = [1, 64], strides = [1, 1]} : vector<1x128xf32> to vector<1x64xf32>
    %19 = tpu.concatenate %17, %18 in 1 : vector<1x64xf32>, vector<1x64xf32> -> vector<1x128xf32>
    %20 = arith.addf %11, %19 : vector<1x128xf32>
    %21 = vector.extract_strided_slice %16 {offsets = [0, 64], sizes = [1, 64], strides = [1, 1]} : vector<1x128xf32> to vector<1x64xf32>
    %cst_8 = arith.constant 0.000000e+00 : f32
    %22 = vector.broadcast %cst_8 : f32 to vector<1x64xf32>
    %23 = tpu.concatenate %21, %22 in 1 : vector<1x64xf32>, vector<1x64xf32> -> vector<1x128xf32>
    %24 = arith.addf %15, %23 : vector<1x128xf32>
    %25 = vector.extract_strided_slice %2 {offsets = [3, 0], sizes = [1, 128], strides = [1, 1]} : vector<8x128xf32> to vector<1x128xf32>
    %cst_9 = arith.constant 0.000000e+00 : f32
    %26 = vector.broadcast %cst_9 : f32 to vector<1x96xf32>
    %27 = vector.extract_strided_slice %25 {offsets = [0, 0], sizes = [1, 32], strides = [1, 1]} : vector<1x128xf32> to vector<1x32xf32>
    %28 = tpu.concatenate %26, %27 in 1 : vector<1x96xf32>, vector<1x32xf32> -> vector<1x128xf32>
    %29 = arith.addf %20, %28 : vector<1x128xf32>
    %30 = vector.extract_strided_slice %25 {offsets = [0, 32], sizes = [1, 96], strides = [1, 1]} : vector<1x128xf32> to vector<1x96xf32>
    %cst_10 = arith.constant 0.000000e+00 : f32
    %31 = vector.broadcast %cst_10 : f32 to vector<1x32xf32>
    %32 = tpu.concatenate %30, %31 in 1 : vector<1x96xf32>, vector<1x32xf32> -> vector<1x128xf32>
    %33 = arith.addf %24, %32 : vector<1x128xf32>
    %cst_11 = arith.constant 0.000000e+00 : f32
    %34 = vector.broadcast %cst_11 : f32 to vector<1x128xf32>
    %cst_12 = arith.constant 0.000000e+00 : f32
    %35 = vector.broadcast %cst_12 : f32 to vector<1x128xf32>
    %36 = vector.extract_strided_slice %2 {offsets = [4, 0], sizes = [1, 128], strides = [1, 1]} : vector<8x128xf32> to vector<1x128xf32>
    %37 = arith.addf %34, %36 : vector<1x128xf32>
    %38 = vector.extract_strided_slice %2 {offsets = [5, 0], sizes = [1, 128], strides = [1, 1]} : vector<8x128xf32> to vector<1x128xf32>
    %cst_13 = arith.constant 0.000000e+00 : f32
    %39 = vector.broadcast %cst_13 : f32 to vector<1x32xf32>
    %40 = vector.extract_strided_slice %38 {offsets = [0, 0], sizes = [1, 96], strides = [1, 1]} : vector<1x128xf32> to vector<1x96xf32>
    %41 = tpu.concatenate %39, %40 in 1 : vector<1x32xf32>, vector<1x96xf32> -> vector<1x128xf32>
    %42 = arith.addf %37, %41 : vector<1x128xf32>
    %43 = vector.extract_strided_slice %38 {offsets = [0, 96], sizes = [1, 32], strides = [1, 1]} : vector<1x128xf32> to vector<1x32xf32>
    %cst_14 = arith.constant 0.000000e+00 : f32
    %44 = vector.broadcast %cst_14 : f32 to vector<1x96xf32>
    %45 = tpu.concatenate %43, %44 in 1 : vector<1x32xf32>, vector<1x96xf32> -> vector<1x128xf32>
    %46 = arith.addf %35, %45 : vector<1x128xf32>
    %47 = vector.extract_strided_slice %2 {offsets = [6, 0], sizes = [1, 128], strides = [1, 1]} : vector<8x128xf32> to vector<1x128xf32>
    %cst_15 = arith.constant 0.000000e+00 : f32
    %48 = vector.broadcast %cst_15 : f32 to vector<1x64xf32>
    %49 = vector.extract_strided_slice %47 {offsets = [0, 0], sizes = [1, 64], strides = [1, 1]} : vector<1x128xf32> to vector<1x64xf32>
    %50 = tpu.concatenate %48, %49 in 1 : vector<1x64xf32>, vector<1x64xf32> -> vector<1x128xf32>
    %51 = arith.addf %42, %50 : vector<1x128xf32>
    %52 = vector.extract_strided_slice %47 {offsets = [0, 64], sizes = [1, 64], strides = [1, 1]} : vector<1x128xf32> to vector<1x64xf32>
    %cst_16 = arith.constant 0.000000e+00 : f32
    %53 = vector.broadcast %cst_16 : f32 to vector<1x64xf32>
    %54 = tpu.concatenate %52, %53 in 1 : vector<1x64xf32>, vector<1x64xf32> -> vector<1x128xf32>
    %55 = arith.addf %46, %54 : vector<1x128xf32>
    %56 = vector.extract_strided_slice %2 {offsets = [7, 0], sizes = [1, 128], strides = [1, 1]} : vector<8x128xf32> to vector<1x128xf32>
    %cst_17 = arith.constant 0.000000e+00 : f32
    %57 = vector.broadcast %cst_17 : f32 to vector<1x96xf32>
    %58 = vector.extract_strided_slice %56 {offsets = [0, 0], sizes = [1, 32], strides = [1, 1]} : vector<1x128xf32> to vector<1x32xf32>
    %59 = tpu.concatenate %57, %58 in 1 : vector<1x96xf32>, vector<1x32xf32> -> vector<1x128xf32>
    %60 = arith.addf %51, %59 : vector<1x128xf32>
    %61 = vector.extract_strided_slice %56 {offsets = [0, 32], sizes = [1, 96], strides = [1, 1]} : vector<1x128xf32> to vector<1x96xf32>
    %cst_18 = arith.constant 0.000000e+00 : f32
    %62 = vector.broadcast %cst_18 : f32 to vector<1x32xf32>
    %63 = tpu.concatenate %61, %62 in 1 : vector<1x96xf32>, vector<1x32xf32> -> vector<1x128xf32>
    %64 = arith.addf %55, %63 : vector<1x128xf32>
    %cst_19 = arith.constant 0.000000e+00 : f32
    %65 = vector.broadcast %cst_19 : f32 to vector<4x128xf32>
    %66 = tpu.concatenate %29, %33, %60, %64, %65 in 0 : vector<1x128xf32>, vector<1x128xf32>, vector<1x128xf32>, vector<1x128xf32>, vector<4x128xf32> -> vector<8x128xf32>
    %c0_20 = arith.constant 0 : index
    %c0_21 = arith.constant 0 : index
    %67 = vector.load %arg3[%c0_20, %c0_21] : memref<8x128xf32, #tpu.memory_space<vmem>>, vector<8x128xf32>
    tpu.vector_store %arg3[%c0_20, %c0_21], %66 {strides = array<i32>} : memref<8x128xf32, #tpu.memory_space<vmem>>, vector<8x128xf32>,
    return
  }
  func.func @transform_0(%arg0: i32) -> (i32, i32) {
    %c0_i32 = arith.constant 0 : i32
    %c0_i32_0 = arith.constant 0 : i32
    %c0_i32_1 = arith.constant 0 : i32
    return %c0_i32, %c0_i32_0 : i32, i32
  }
  func.func @transform_1(%arg0: i32) -> (i32, i32) {
    %c0_i32 = arith.constant 0 : i32
    %c0_i32_0 = arith.constant 0 : i32
    %c0_i32_1 = arith.constant 0 : i32
    return %c0_i32, %c0_i32_0 : i32, i32
  }
  func.func @transform_2(%arg0: i32) -> (i32, i32) {
    %c0_i32 = arith.constant 0 : i32
    %c0_i32_0 = arith.constant 0 : i32
    %c0_i32_1 = arith.constant 0 : i32
    return %c0_i32, %c0_i32_0 : i32, i32
  }
}

</mosaic_0001>

<llo_original>
// kernel: tpu_custom_call.1
$region0: #{tpu_custom_call.1}
  #allocation0 [shape = 'u32[]', space=smem, size = 0x4, offset = 0x4, fixed_abs, tag = 'smem constant byte address 0x4 - core index']
  #allocation1 [shape = 'u32[144,128]{1,0:T(1,128)}', space=vmem, size = 0x12000, scoped, tag = 'internal scratch']
  %s0 = inlined_call_operand.hbm [shape: f32[8,256], index: 0, kind: input, shape index: {}]
  %s1 = inlined_call_operand.hbm [shape: f32[256,128], index: 1, kind: input, shape index: {}]
  %s2 = inlined_call_operand.hbm [shape: f32[8,128], index: 2, kind: output, shape index: {}]
  %s3 = sld [smem:[#allocation0]]
  $region26: #{tpu_custom_call.1} parent=0
    _
  %s5 = ssub.s32 1, %s3
  %s6 = scalar_select 0, %s5, %s3
  $region1: #{tpu_custom_call.1} parent=0
    #allocation2 [shape = 'u8[8192]{0}', space=vmem, size = 0x2000, scoped, tag = 'input window, operand 0, single buffered']
    #allocation3 [shape = 's32[1]{0}', space=sflag, size = 0x4, scoped, tag = 'scoped memory for tpu_custom_call.1']
    #allocation4 [shape = 's32[1]{0}', space=sflag, size = 0x4, scoped, tag = 'scoped memory for tpu_custom_call.1']
    #allocation5 [shape = 'u8[131072]{0}', space=vmem, size = 0x20000, scoped, tag = 'input window, operand 1, single buffered']
    #allocation6 [shape = 's32[1]{0}', space=sflag, size = 0x4, scoped, tag = 'scoped memory for tpu_custom_call.1']
    #allocation7 [shape = 'u8[4096]{0}', space=vmem, size = 0x1000, scoped, tag = 'output window, operand 0, single buffered']
    %7 = vsyncpa [#allocation3], 0
    %8 = vsyncpa [#allocation6], 0
    %9 = vsyncpa [#allocation4], 0
    // Predicated region
    $region2: #{tpu_custom_call.1} parent=1 // pred_check
      _
    $region3: #{tpu_custom_call.1} parent=1 // pred_check_branch
      %11 = sbr.rel (0) target = $region5
    $region4: #{tpu_custom_call.1} parent=1 // pred_region
      %s13 = ssub.s32 256, 256
      %14 = vsyncadd [#allocation3], %s13
      %s16 = sshll.u32 [#allocation2], 4
      %s17 = int_to_ptr.vmem [resolvable:$true] %s16
      %19 = dma.hbm_to_vmem [thread:$0]  %s0, 256, %s17, [#allocation3]
    $region5: #{tpu_custom_call.1} parent=1 // pred_fallthru
      _
    // Predicated region
    $region6: #{tpu_custom_call.1} parent=1 // pred_check
      _
    $region7: #{tpu_custom_call.1} parent=1 // pred_check_branch
      %21 = sbr.rel (0) target = $region9
    $region8: #{tpu_custom_call.1} parent=1 // pred_region
      %s23 = ssub.s32 4096, 4096
      %24 = vsyncadd [#allocation6], %s23
      %s25 = sshll.u32 [#allocation5], 4
      %s26 = int_to_ptr.vmem [resolvable:$true] %s25
      %31 = dma.hbm_to_vmem [thread:$0]  %s1, 4096, %s26, [#allocation6], 128, 128, 8
    $region9: #{tpu_custom_call.1} parent=1 // pred_fallthru
      _
    // Predicated region
    $region10: #{tpu_custom_call.1} parent=1 // pred_check
      _
    $region11: #{tpu_custom_call.1} parent=1 // pred_check_branch
      %33 = sbr.rel (0) target = $region13
    $region12: #{tpu_custom_call.1} parent=1 // pred_region
      %34 = dma.done [#allocation3], 256
    $region13: #{tpu_custom_call.1} parent=1 // pred_fallthru
      _
    // Predicated region
    $region14: #{tpu_custom_call.1} parent=1 // pred_check
      _
    $region15: #{tpu_custom_call.1} parent=1 // pred_check_branch
      %36 = sbr.rel (0) target = $region17
    $region16: #{tpu_custom_call.1} parent=1 // pred_region
      %37 = dma.done [#allocation6], 4096
    $region17: #{tpu_custom_call.1} parent=1 // pred_fallthru
      _
    %v38 = vld [vmem:[#allocation2] sm:$0xff]
    %v39 = vld [vmem:[#allocation2 + $0x8] sm:$0xff]
    %v40 = vld [vmem:[#allocation5] sm:$0xff]
    %v41 = vld [vmem:[#allocation5 + $0x8] sm:$0xff]
    %v42 = vld [vmem:[#allocation5 + $0x10] sm:$0xff]
    %v43 = vld [vmem:[#allocation5 + $0x18] sm:$0xff]
    %v44 = vld [vmem:[#allocation5 + $0x20] sm:$0xff]
    %v45 = vld [vmem:[#allocation5 + $0x28] sm:$0xff]
    %v46 = vld [vmem:[#allocation5 + $0x30] sm:$0xff]
    %v47 = vld [vmem:[#allocation5 + $0x38] sm:$0xff]
    %v48 = vld [vmem:[#allocation5 + $0x40] sm:$0xff]
    %v49 = vld [vmem:[#allocation5 + $0x48] sm:$0xff]
    %v50 = vld [vmem:[#allocation5 + $0x50] sm:$0xff]
    %v51 = vld [vmem:[#allocation5 + $0x58] sm:$0xff]
    %v52 = vld [vmem:[#allocation5 + $0x60] sm:$0xff]
    %v53 = vld [vmem:[#allocation5 + $0x68] sm:$0xff]
    %v54 = vld [vmem:[#allocation5 + $0x70] sm:$0xff]
    %v55 = vld [vmem:[#allocation5 + $0x78] sm:$0xff]
    %v56 = vld [vmem:[#allocation5 + $0x80] sm:$0xff]
    %v57 = vld [vmem:[#allocation5 + $0x88] sm:$0xff]
    %v58 = vld [vmem:[#allocation5 + $0x90] sm:$0xff]
    %v59 = vld [vmem:[#allocation5 + $0x98] sm:$0xff]
    %v60 = vld [vmem:[#allocation5 + $0xa0] sm:$0xff]
    %v61 = vld [vmem:[#allocation5 + $0xa8] sm:$0xff]
    %v62 = vld [vmem:[#allocation5 + $0xb0] sm:$0xff]
    %v63 = vld [vmem:[#allocation5 + $0xb8] sm:$0xff]
    %v64 = vld [vmem:[#allocation5 + $0xc0] sm:$0xff]
    %v65 = vld [vmem:[#allocation5 + $0xc8] sm:$0xff]
    %v66 = vld [vmem:[#allocation5 + $0xd0] sm:$0xff]
    %v67 = vld [vmem:[#allocation5 + $0xd8] sm:$0xff]
    %v68 = vld [vmem:[#allocation5 + $0xe0] sm:$0xff]
    %v69 = vld [vmem:[#allocation5 + $0xe8] sm:$0xff]
    %v70 = vld [vmem:[#allocation5 + $0xf0] sm:$0xff]
    %v71 = vld [vmem:[#allocation5 + $0xf8] sm:$0xff]
    %72 = vmatprep.subr.mxu0 0.0
    %73 = vmatpush1.msra.mxu0 %v40
    %74 = vmatprep.subr.mxu0 0.0
    %75 = vmatpush1.msra.mxu0 %v41
    %76 = vmatprep.subr.mxu0 0.0
    %77 = vmatpush1.msra.mxu0 %v42
    %78 = vmatprep.subr.mxu0 0.0
    %79 = vmatpush1.msra.mxu0 %v43
    %80 = vmatprep.subr.mxu0 0.0
    %81 = vmatpush1.msra.mxu0 %v44
    %82 = vmatprep.subr.mxu0 0.0
    %83 = vmatpush1.msra.mxu0 %v45
    %84 = vmatprep.subr.mxu0 0.0
    %85 = vmatpush1.msra.mxu0 %v46
    %86 = vmatprep.subr.mxu0 0.0
    %87 = vmatpush1.msra.mxu0 %v47
    %88 = vmatprep.subr.mxu0 0.0
    %89 = vmatpush1.msra.mxu0 %v48
    %90 = vmatprep.subr.mxu0 0.0
    %91 = vmatpush1.msra.mxu0 %v49
    %92 = vmatprep.subr.mxu0 0.0
    %93 = vmatpush1.msra.mxu0 %v50
    %94 = vmatprep.subr.mxu0 0.0
    %95 = vmatpush1.msra.mxu0 %v51
    %96 = vmatprep.subr.mxu0 0.0
    %97 = vmatpush1.msra.mxu0 %v52
    %98 = vmatprep.subr.mxu0 0.0
    %99 = vmatpush1.msra.mxu0 %v53
    %100 = vmatprep.subr.mxu0 0.0
    %101 = vmatpush1.msra.mxu0 %v54
    %102 = vmatprep.subr.mxu0 0.0
    %103 = vmatpush1.msra.mxu0 %v55
    %104 = vmatprep.subr.mxu0 0.0
    %105 = vmatpush1.msra.mxu0 %v56
    %106 = vmatprep.subr.mxu0 0.0
    %107 = vmatpush1.msra.mxu0 %v57
    %108 = vmatprep.subr.mxu0 0.0
    %109 = vmatpush1.msra.mxu0 %v58
    %110 = vmatprep.subr.mxu0 0.0
    %111 = vmatpush1.msra.mxu0 %v59
    %112 = vmatprep.subr.mxu0 0.0
    %113 = vmatpush1.msra.mxu0 %v60
    %114 = vmatprep.subr.mxu0 0.0
    %115 = vmatpush1.msra.mxu0 %v61
    %116 = vmatprep.subr.mxu0 0.0
    %117 = vmatpush1.msra.mxu0 %v62
    %118 = vmatprep.subr.mxu0 0.0
    %119 = vmatpush1.msra.mxu0 %v63
    %120 = vmatprep.subr.mxu0 0.0
    %121 = vmatpush1.msra.mxu0 %v64
    %122 = vmatprep.subr.mxu0 0.0
    %123 = vmatpush1.msra.mxu0 %v65
    %124 = vmatprep.subr.mxu0 0.0
    %125 = vmatpush1.msra.mxu0 %v66
    %126 = vmatprep.subr.mxu0 0.0
    %127 = vmatpush1.msra.mxu0 %v67
    %128 = vmatprep.subr.mxu0 0.0
    %129 = vmatpush1.msra.mxu0 %v68
    %130 = vmatprep.subr.mxu0 0.0
    %131 = vmatpush1.msra.mxu0 %v69
    %132 = vmatprep.subr.mxu0 0.0
    %133 = vmatpush1.msra.mxu0 %v70
    %134 = vmatprep.subr.mxu0 0.0
    %135 = vmatpush1.msra.mxu0 %v71
    %136 = vmatprep.mubr.f32.mxu0 %v39
    %137 = vmatmul.mubr.f32.gmra.mrb[0].mxu0 %v38
    %v138 = vpop.f32.mrb[0].mxu0
    %v139 = vadd.f32 0.0, %v138
    %v140 = vpop.f32.mrb[0].mxu0
    %141 = vdwg.mxu0
    %v142 = vadd.f32 %v139, 0.0
    %v144 = vrot.slane %v139, 1
    %145 = vrot.lane.b32.xlu0 %v144, 32
    %v146 = vpop.permute.xlu0 %145
    %vm148 = vcmask 261120
    %v149 = vsel %vm148, 0.0, %v146
    %v150 = vadd.f32 %v142, %v149
    %151 = vrot.lane.b32.xlu0 %v139, 32
    %v152 = vpop.permute.xlu0 %151
    %v154 = vsel %vm148, %v152, 0.0
    %v155 = vadd.f32 %v154, 0.0
    %v156 = vrot.slane %v139, 2
    %157 = vrot.lane.b32.xlu0 %v156, 64
    %v158 = vpop.permute.xlu0 %157
    %vm160 = vcmask 523264
    %v161 = vsel %vm160, 0.0, %v158
    %v162 = vadd.f32 %v150, %v161
    %163 = vrot.lane.b32.xlu0 %v139, 64
    %v164 = vpop.permute.xlu0 %163
    %v166 = vsel %vm160, %v164, 0.0
    %v168 = vrot.slane %v166, 1
    %v170 = vadd.f32 %v155, %v168
    %v171 = vrot.slane %v139, 3
    %172 = vrot.lane.b32.xlu0 %v171, 96
    %v173 = vpop.permute.xlu0 %172
    %vm175 = vcmask 785408
    %v176 = vsel %vm175, 0.0, %v173
    %v177 = vadd.f32 %v162, %v176
    %178 = vrot.lane.b32.xlu0 %v139, 96
    %v179 = vpop.permute.xlu0 %178
    %v181 = vsel %vm175, %v179, 0.0
    %v183 = vrot.slane %v181, 2
    %v185 = vadd.f32 %v170, %v183
    %v186 = vrot.slane %v139, 5
    %187 = vrot.lane.b32.xlu0 %v186, 32
    %v188 = vpop.permute.xlu0 %187
    %v190 = vsel %vm148, 0.0, %v188
    %v192 = vrot.slane %v190, 4
    %v194 = vadd.f32 %v142, %v192
    %v195 = vrot.slane %v139, 6
    %196 = vrot.lane.b32.xlu0 %v195, 64
    %v197 = vpop.permute.xlu0 %196
    %v199 = vsel %vm160, 0.0, %v197
    %v201 = vrot.slane %v199, 4
    %v203 = vadd.f32 %v194, %v201
    %v204 = vrot.slane %v139, 7
    %205 = vrot.lane.b32.xlu0 %v204, 96
    %v206 = vpop.permute.xlu0 %205
    %v208 = vsel %vm175, 0.0, %v206
    %v210 = vrot.slane %v208, 4
    %v212 = vadd.f32 %v203, %v210
    %v214 = vrot.slane %v212, 2
    %v217 = vrot.slane %v185, 2
    %vm219 = vcmask 1040384
    %v220 = vsel %vm219, %v177, %v185
    %vm221 = vcmask 1041408
    %v222 = vsel %vm221, %v220, %v214
    %vm223 = vcmask 1042432
    %v224 = vsel %vm223, %v222, %v217
    %vm225 = vcmask 1043456
    %v226 = vsel %vm225, %v224, 0.0
    %227 = vst [vmem:[#allocation7] sm:$0xff] %v226
    // Predicated region
    $region18: #{tpu_custom_call.1} parent=1 // pred_check
      _
    $region19: #{tpu_custom_call.1} parent=1 // pred_check_branch
      %229 = sbr.rel (0) target = $region21
    $region20: #{tpu_custom_call.1} parent=1 // pred_region
      %s231 = ssub.s32 128, 128
      %232 = vsyncadd [#allocation4], %s231
      %s234 = sshll.u32 [#allocation7], 4
      %s235 = int_to_ptr.vmem [resolvable:$true] %s234
      %237 = dma.vmem_to_hbm [thread:$0]  %s235, 128, %s2, [#allocation4]
    $region21: #{tpu_custom_call.1} parent=1 // pred_fallthru
      _
    // Predicated region
    $region22: #{tpu_custom_call.1} parent=1 // pred_check
      _
    $region23: #{tpu_custom_call.1} parent=1 // pred_check_branch
      %239 = sbr.rel (0) target = $region25
    $region24: #{tpu_custom_call.1} parent=1 // pred_region
      %240 = dma.done [#allocation4], 128
    $region25: #{tpu_custom_call.1} parent=1 // pred_fallthru
      _
    %241 = vsyncpa [#allocation3], 1
    %242 = vsyncpa [#allocation6], 1
    %243 = vsyncpa [#allocation4], 1

</llo_original>
